<compile_context>
chip_gen: v7x
topology: tpu7x:2x2x1
jax: 0.10.0
libtpu: 0.0.40
codegen_flags: <defaults>
</compile_context>

<pallas_src>
import jax
import jax.numpy as jnp
from jax import lax
from jax.experimental import pallas as pl
from jax.experimental.pallas import tpu as pltpu


def mlp_kernel(x_ref, w1_ref, b1_ref, w2_ref, b2_ref, w3_ref, b3_ref, o_ref):
    # x_ref : (TB, 8)  f32   -- one batch tile, straight from HBM (PyTorch layout)
    # w*    : (out,in) bf16  -- VMEM-resident (constant block index)
    # b*    : (out, 1) f32
    # o_ref : (1,  TB) f32   -- batch on lanes -> lane-dense stores
    x = x_ref[...].astype(jnp.bfloat16)                                 # in-kernel cast (VPU)
    # Contract the feature axis of both operands ('oi,bi->ob'): this puts the
    # batch on the lane axis without any wrapper-side transpose of x (same
    # NT-form dot_general used for q@k^T in attention kernels).
    h1 = lax.dot_general(w1_ref[...], x, (((1,), (1,)), ((), ())),
                         preferred_element_type=jnp.float32)            # (32, TB)
    h1 = jnp.maximum(h1 + b1_ref[...], 0.0)                             # f32 bias + ReLU
    h2 = jnp.dot(w2_ref[...], h1.astype(jnp.bfloat16),
                 preferred_element_type=jnp.float32)                    # (16, TB)
    h2 = jnp.maximum(h2 + b2_ref[...], 0.0)
    out = jnp.dot(w3_ref[...], h2.astype(jnp.bfloat16),
                  preferred_element_type=jnp.float32) + b3_ref[...]     # (1, TB)
    o_ref[...] = out.astype(o_ref.dtype)
    # NOTE: if profiling ever shows VMEM ld/st filler from the (32, TB) f32
    # intermediate at very large TB, iterate over 1-2K-lane sub-chunks of
    # x_ref with lax.fori_loop + pl.ds inside this body; not needed at the
    # default tile sizes.


def _round_up(n, m):
    return ((n + m - 1) // m) * m


def simple_nn_forward(x, params, *, tile_b=32768):
    """x: (B, 8) float32 (PyTorch layout). Returns (B, 1) float32."""
    w1, b1, w2, b2, w3, b3 = params
    B = x.shape[0]
    assert x.shape[1] == 8

    # Batch tile (lane dim inside the kernel):
    #  * big by default (32K lanes ~= 1 MiB of x per step) to amortize the
    #    ~600-cycle per-grid-step overhead;
    #  * capped at ceil(B/2) rounded to 256 so the grid has >= 2 parallel
    #    steps for v7x's two TensorCores (256 alignment also fills the
    #    2x256 MXU N-dim on v6e/v7x; harmless on v5e);
    #  * for small B a single full-extent block (tb == B) is used — full-dim
    #    blocks are always layout-legal, so no padding is ever materialized.
    if B < 512:
        tb = B
    else:
        tb = min(tile_b, _round_up(pl.cdiv(B, 2), 256))
    grid = pl.cdiv(B, tb)          # ragged last tile handled by masked stores

    # Constant block index => weights/biases stay VMEM-resident across steps.
    const = lambda a: pl.BlockSpec(a.shape, lambda i: (0, 0))

    out = pl.pallas_call(
        mlp_kernel,
        out_shape=jax.ShapeDtypeStruct((1, B), jnp.float32),
        grid=(grid,),
        in_specs=[pl.BlockSpec((tb, 8), lambda i: (i, 0)),   # x streamed as-is
                  const(w1), const(b1), const(w2), const(b2),
                  const(w3), const(b3)],
        out_specs=pl.BlockSpec((1, tb), lambda i: (0, i)),
        compiler_params=pltpu.CompilerParams(
            # Independent batch tiles -> shard across both TCs on v7x
            # (harmless no-op on v5e/v6e).
            dimension_semantics=("parallel",),
            # Explicit limit: v5e scoped default is only 16 MiB; ~280*tb bytes
            # at tb=32K is ~9 MiB, comfortably inside 32 MiB on every gen.
            vmem_limit_bytes=32 * 1024 * 1024,
        ),
    )(x, w1, b1, w2, b2, w3, b3)

    # (1, B) -> (B, 1): same row-major element order, pure metadata reshape.
    return out.reshape(B, 1)


def init_params(key):
    # PyTorch Linear weight layout (out_features, in_features); bf16 weights
    # (MXU-native inputs), f32 biases (added on the f32 accumulator).
    k1, k2, k3, k4, k5, k6 = jax.random.split(key, 6)
    w1 = (jax.random.normal(k1, (32, 8), jnp.float32) * 0.1).astype(jnp.bfloat16)
    b1 = jax.random.normal(k2, (32, 1), jnp.float32) * 0.1
    w2 = (jax.random.normal(k3, (16, 32), jnp.float32) * 0.1).astype(jnp.bfloat16)
    b2 = jax.random.normal(k4, (16, 1), jnp.float32) * 0.1
    w3 = (jax.random.normal(k5, (1, 16), jnp.float32) * 0.1).astype(jnp.bfloat16)
    b3 = jax.random.normal(k6, (1, 1), jnp.float32) * 0.1
    return (w1, b1, w2, b2, w3, b3)


def ref_forward(x, params):
    # Plain-JAX reference with the same dtypes/math as the kernel.
    w1, b1, w2, b2, w3, b3 = params
    xb = x.astype(jnp.bfloat16)
    h1 = jnp.maximum(jnp.dot(xb, w1.T, preferred_element_type=jnp.float32) + b1.T, 0.0)
    h2 = jnp.maximum(jnp.dot(h1.astype(jnp.bfloat16), w2.T,
                             preferred_element_type=jnp.float32) + b2.T, 0.0)
    out = jnp.dot(h2.astype(jnp.bfloat16), w3.T,
                  preferred_element_type=jnp.float32) + b3.T
    return out                                                           # (B, 1)


if __name__ == "__main__":
    key = jax.random.PRNGKey(0)
    k_params, k1, k2, k3 = jax.random.split(key, 4)
    params = init_params(k_params)

    # Multi-tile case: B=512 -> tile 256, grid of 2 (feeds both v7x TCs).
    x_big = jax.random.normal(k1, (512, 8), jnp.float32)
    out_big = jax.block_until_ready(simple_nn_forward(x_big, params))
    assert out_big.shape == (512, 1)
    assert jnp.allclose(out_big, ref_forward(x_big, params), atol=1e-4, rtol=1e-4)

    # Ragged case: B=640 -> tile 512, grid of 2, masked tail block (no padding).
    x_rag = jax.random.normal(k2, (640, 8), jnp.float32)
    out_rag = jax.block_until_ready(simple_nn_forward(x_rag, params))
    assert out_rag.shape == (640, 1)
    assert jnp.allclose(out_rag, ref_forward(x_rag, params), atol=1e-4, rtol=1e-4)

    # Tiny-batch case: B=8 -> single full-extent block.
    x_small = jax.random.normal(k3, (8, 8), jnp.float32)
    out_small = jax.block_until_ready(simple_nn_forward(x_small, params))
    assert out_small.shape == (8, 1)
    assert jnp.allclose(out_small, ref_forward(x_small, params), atol=1e-4, rtol=1e-4)

    # Looser sanity check against pure-f32 PyTorch-equivalent math (bf16
    # weights/inputs introduce ~0.4% relative rounding).
    w1, b1, w2, b2, w3, b3 = [p.astype(jnp.float32) for p in params]
    f32 = jnp.maximum(x_big @ w1.T + b1.T, 0.0)
    f32 = jnp.maximum(f32 @ w2.T + b2.T, 0.0)
    f32 = f32 @ w3.T + b3.T
    assert jnp.allclose(out_big, f32, atol=5e-2, rtol=5e-2)

    print("KERNEL_OK")
</pallas_src>

<mosaic_0001>
module attributes {stable_mosaic.version = 11 : i64} {
  func.func @mlp_kernel(%arg0: i32, %arg1: memref<256x8xf32, #tpu.memory_space<vmem>>, %arg2: memref<32x8xbf16, #tpu.memory_space<vmem>>, %arg3: memref<32x1xf32, #tpu.memory_space<vmem>>, %arg4: memref<16x32xbf16, #tpu.memory_space<vmem>>, %arg5: memref<16x1xf32, #tpu.memory_space<vmem>>, %arg6: memref<1x16xbf16, #tpu.memory_space<vmem>>, %arg7: memref<1x1xf32, #tpu.memory_space<vmem>>, %arg8: memref<1x256xf32, #tpu.memory_space<vmem>>) attributes {dimension_semantics = [#tpu.dimension_semantics<parallel>], iteration_bounds = array<i64: 2>, scalar_prefetch = 0 : i64, scratch_operands = 0 : i64, tpu.core_type = #tpu.core_type<tc>, window_params = [{transform_indices = @transform_0, window_bounds = array<i64: 256, 8>}, {pipeline_mode = #tpu.pipeline_mode<synchronous>, transform_indices = @transform_1, window_bounds = array<i64: 32, 8>}, {pipeline_mode = #tpu.pipeline_mode<synchronous>, transform_indices = @transform_2, window_bounds = array<i64: 32, 1>}, {pipeline_mode = #tpu.pipeline_mode<synchronous>, transform_indices = @transform_3, window_bounds = array<i64: 16, 32>}, {pipeline_mode = #tpu.pipeline_mode<synchronous>, transform_indices = @transform_4, window_bounds = array<i64: 16, 1>}, {pipeline_mode = #tpu.pipeline_mode<synchronous>, transform_indices = @transform_5, window_bounds = array<i64: 1, 16>}, {pipeline_mode = #tpu.pipeline_mode<synchronous>, transform_indices = @transform_6, window_bounds = array<i64: 1, 1>}, {transform_indices = @transform_7, window_bounds = array<i64: 1, 256>}]} {
    %c0 = arith.constant 0 : index
    %c0_0 = arith.constant 0 : index
    %0 = vector.load %arg1[%c0, %c0_0] : memref<256x8xf32, #tpu.memory_space<vmem>>, vector<256x8xf32>
    %1 = arith.truncf %0 : vector<256x8xf32> to vector<256x8xbf16>
    %c0_1 = arith.constant 0 : index
    %c0_2 = arith.constant 0 : index
    %2 = vector.load %arg2[%c0_1, %c0_2] : memref<32x8xbf16, #tpu.memory_space<vmem>>, vector<32x8xbf16>
    %cst = arith.constant dense<0.000000e+00> : vector<32x256xf32>
    %3 = tpu.matmul %2, %1, %cst {dimension_numbers = #tpu.dot_dimension_numbers<[1], [1], [0], [0], [0, 0, 1, 0], [], []>} : vector<32x8xbf16>, vector<256x8xbf16>, vector<32x256xf32> -> vector<32x256xf32>
    %c0_3 = arith.constant 0 : index
    %c0_4 = arith.constant 0 : index
    %4 = vector.load %arg3[%c0_3, %c0_4] : memref<32x1xf32, #tpu.memory_space<vmem>>, vector<32x1xf32>
    %5 = vector.broadcast %4 : vector<32x1xf32> to vector<32x256xf32>
    %6 = arith.addf %3, %5 : vector<32x256xf32>
    %cst_5 = arith.constant 0.000000e+00 : f32
    %7 = vector.broadcast %cst_5 : f32 to vector<32x256xf32>
    %8 = arith.maximumf %6, %7 : vector<32x256xf32>
    %c0_6 = arith.constant 0 : index
    %c0_7 = arith.constant 0 : index
    %9 = vector.load %arg4[%c0_6, %c0_7] : memref<16x32xbf16, #tpu.memory_space<vmem>>, vector<16x32xbf16>
    %10 = arith.truncf %8 : vector<32x256xf32> to vector<32x256xbf16>
    %cst_8 = arith.constant dense<0.000000e+00> : vector<16x256xf32>
    %11 = tpu.matmul %9, %10, %cst_8 {dimension_numbers = #tpu.dot_dimension_numbers<[1], [0], [0], [1], [0, 0, 1, 1], [], []>} : vector<16x32xbf16>, vector<32x256xbf16>, vector<16x256xf32> -> vector<16x256xf32>
    %c0_9 = arith.constant 0 : index
    %c0_10 = arith.constant 0 : index
    %12 = vector.load %arg5[%c0_9, %c0_10] : memref<16x1xf32, #tpu.memory_space<vmem>>, vector<16x1xf32>
    %13 = vector.broadcast %12 : vector<16x1xf32> to vector<16x256xf32>
    %14 = arith.addf %11, %13 : vector<16x256xf32>
    %cst_11 = arith.constant 0.000000e+00 : f32
    %15 = vector.broadcast %cst_11 : f32 to vector<16x256xf32>
    %16 = arith.maximumf %14, %15 : vector<16x256xf32>
    %c0_12 = arith.constant 0 : index
    %c0_13 = arith.constant 0 : index
    %17 = vector.load %arg6[%c0_12, %c0_13] : memref<1x16xbf16, #tpu.memory_space<vmem>>, vector<1x16xbf16>
    %18 = arith.truncf %16 : vector<16x256xf32> to vector<16x256xbf16>
    %cst_14 = arith.constant dense<0.000000e+00> : vector<1x256xf32>
    %19 = tpu.matmul %17, %18, %cst_14 {dimension_numbers = #tpu.dot_dimension_numbers<[1], [0], [0], [1], [0, 0, 1, 1], [], []>} : vector<1x16xbf16>, vector<16x256xbf16>, vector<1x256xf32> -> vector<1x256xf32>
    %c0_15 = arith.constant 0 : index
    %c0_16 = arith.constant 0 : index
    %20 = vector.load %arg7[%c0_15, %c0_16] : memref<1x1xf32, #tpu.memory_space<vmem>>, vector<1x1xf32>
    %21 = vector.broadcast %20 : vector<1x1xf32> to vector<1x256xf32>
    %22 = arith.addf %19, %21 : vector<1x256xf32>
    %c0_17 = arith.constant 0 : index
    %c0_18 = arith.constant 0 : index
    %23 = vector.load %arg8[%c0_17, %c0_18] : memref<1x256xf32, #tpu.memory_space<vmem>>, vector<1x256xf32>
    tpu.vector_store %arg8[%c0_17, %c0_18], %22 {strides = array<i32>} : memref<1x256xf32, #tpu.memory_space<vmem>>, vector<1x256xf32>,
    return
  }
  func.func @transform_0(%arg0: i32) -> (i32, i32) {
    %c0_i32 = arith.constant 0 : i32
    %c0_i32_0 = arith.constant 0 : i32
    return %arg0, %c0_i32 : i32, i32
  }
  func.func @transform_1(%arg0: i32) -> (i32, i32) {
    %c0_i32 = arith.constant 0 : i32
    %c0_i32_0 = arith.constant 0 : i32
    %c0_i32_1 = arith.constant 0 : i32
    return %c0_i32, %c0_i32_0 : i32, i32
  }
  func.func @transform_2(%arg0: i32) -> (i32, i32) {
    %c0_i32 = arith.constant 0 : i32
    %c0_i32_0 = arith.constant 0 : i32
    %c0_i32_1 = arith.constant 0 : i32
    return %c0_i32, %c0_i32_0 : i32, i32
  }
  func.func @transform_3(%arg0: i32) -> (i32, i32) {
    %c0_i32 = arith.constant 0 : i32
    %c0_i32_0 = arith.constant 0 : i32
    %c0_i32_1 = arith.constant 0 : i32
    return %c0_i32, %c0_i32_0 : i32, i32
  }
  func.func @transform_4(%arg0: i32) -> (i32, i32) {
    %c0_i32 = arith.constant 0 : i32
    %c0_i32_0 = arith.constant 0 : i32
    %c0_i32_1 = arith.constant 0 : i32
    return %c0_i32, %c0_i32_0 : i32, i32
  }
  func.func @transform_5(%arg0: i32) -> (i32, i32) {
    %c0_i32 = arith.constant 0 : i32
    %c0_i32_0 = arith.constant 0 : i32
    %c0_i32_1 = arith.constant 0 : i32
    return %c0_i32, %c0_i32_0 : i32, i32
  }
  func.func @transform_6(%arg0: i32) -> (i32, i32) {
    %c0_i32 = arith.constant 0 : i32
    %c0_i32_0 = arith.constant 0 : i32
    %c0_i32_1 = arith.constant 0 : i32
    return %c0_i32, %c0_i32_0 : i32, i32
  }
  func.func @transform_7(%arg0: i32) -> (i32, i32) {
    %c0_i32 = arith.constant 0 : i32
    %c0_i32_0 = arith.constant 0 : i32
    return %c0_i32, %arg0 : i32, i32
  }
}

</mosaic_0001>

<llo_original>
// kernel: tpu_custom_call.1
$region0: #{tpu_custom_call.1}
  #allocation0 [shape = 'u32[]', space=smem, size = 0x4, offset = 0x4, fixed_abs, tag = 'smem constant byte address 0x4 - core index']
  #allocation1 [shape = 'u32[144,128]{1,0:T(1,128)}', space=vmem, size = 0x12000, scoped, tag = 'internal scratch']
  #allocation2 [shape = 'f32[1,1]{1,0:T(1,128)S(1)}', space=vmem, size = 0x200, scoped, tag = 'scoped memory for tpu_custom_call.1']
  %s0 = inlined_call_operand.vmem [shape: f32[512,8], index: 0, kind: input, shape index: {}]
  %s1 = inlined_call_operand.vmem [shape: bf16[32,8], index: 1, kind: input, shape index: {}]
  %s2 = inlined_call_operand.vmem [shape: f32[32,1], index: 2, kind: input, shape index: {}]
  %s3 = inlined_call_operand.vmem [shape: bf16[16,32], index: 3, kind: input, shape index: {}]
  %s4 = inlined_call_operand.vmem [shape: f32[16,1], index: 4, kind: input, shape index: {}]
  %s5 = inlined_call_operand.vmem [shape: bf16[1,16], index: 5, kind: input, shape index: {}]
  %s6 = inlined_call_operand.<no memory space> [shape: f32[1,1], index: 6, kind: input, shape index: {}]
  %s7 = inlined_call_operand.hbm [shape: f32[1,512], index: 7, kind: output, shape index: {}]
  %s8 = sld [smem:[#allocation0]]
  $region61: #{tpu_custom_call.1} parent=0
    _
  %s10 = ssub.s32 1, %s8
  %s11 = scalar_select 0, %s10, %s8
  %v12 = vstv %s6
  %13 = vst [vmem:[#allocation2] sm:$0x1] %v12
  $region1: #{tpu_custom_call.1} parent=0
    #allocation3 [shape = 'u8[2048]{0}', space=vmem, size = 0x800, scoped, tag = 'output window, operand 0']
    #allocation4 [shape = 's32[2]{0}', space=sflag, size = 0x8, scoped, tag = 'scoped memory for tpu_custom_call.1']
    %14 = vsyncpa [#allocation4], 0
    %s15 = scalar_lea.sflag [#allocation4], 1
    %16 = vsyncpa %s15, 0
    loop: start=0, step=1, limit=4
    $region2: #{tpu_custom_call.1} parent=1 // loop_pre_header
      _
    $region3: #{tpu_custom_call.1} parent=1 // loop_header
      %s18 = sphi 0, %s22
      %p19 = scmp.ge.s32.totalorder %s18, 4
      %s28 = sphi 0, %s30
      %s31 = sphi 0, %s28
      %s32 = sphi 0, %s31
      %s48 = sphi 0, %s32
      %s52 = sphi 0, %s52
      %s54 = sphi 0, %s52
      %s55 = sphi 0, %s54
      %s69 = sphi 0, %s55
      %s73 = sphi 0, %s73
      %s75 = sphi 0, %s73
      %s76 = sphi 0, %s75
      %s90 = sphi 0, %s76
      %s94 = sphi 0, %s94
      %s96 = sphi 0, %s94
      %s97 = sphi 0, %s96
      %s111 = sphi 0, %s97
      %s115 = sphi 0, %s115
      %s117 = sphi 0, %s115
      %s118 = sphi 0, %s117
      %s132 = sphi 0, %s118
      %s136 = sphi 0, %s136
      %s138 = sphi 0, %s136
      %s139 = sphi 0, %s138
      %s153 = sphi 0, %s139
      %s157 = sphi 0, %s157
      %s159 = sphi 0, %s157
      %s160 = sphi 0, %s159
      %s174 = sphi 0, %s160
      %s180 = sphi 0, %s182
      %s183 = sphi 0, %s180
      %s184 = sphi 0, %s183
      %s200 = sphi 0, %s184
    $region4: #{tpu_custom_call.1} parent=1 // loop_header_branch
      %21 = sbr.rel (%p19) target = $region8
    $region5: #{tpu_custom_call.1} parent=1 // loop_body
      %s23 = ssub.s32 %s18, 1
      %s24 = ssub.s32 %s18, 2
      %s25 = sadd.s32 %s18, 1
      %s26 = ssub.s32 %s18, %s25
      %p27 = scmp.eq.s32.totalorder %s26, 0
      %s29 = sadd.s32 %s28, 1
      %s30 = scalar_select %p27, %s28, %s29
      %p33 = pneg %p27
      %p34 = scmp.eq.s32.totalorder %s18, 1
      %p35 = por %p33, %p34
      %p36 = scmp.ne.s32.totalorder %s28, %s31
      %p37 = scmp.eq.s32.totalorder %s18, 0
      %p38 = por %p36, %p37
      %p39 = scmp.ne.s32.totalorder %s28, %s31
      %p40 = scmp.eq.s32.totalorder %s23, 1
      %p41 = por %p39, %p40
      %p42 = scmp.ne.s32.totalorder %s31, %s32
      %p43 = scmp.eq.s32.totalorder %s23, 0
      %p44 = por %p42, %p43
      %p45 = scmp.ne.s32.totalorder %s31, %s32
      %p46 = scmp.eq.s32.totalorder %s24, 1
      %p47 = por %p45, %p46
      %p49 = scmp.ne.s32.totalorder %s32, %s48
      %p50 = scmp.eq.s32.totalorder %s24, 0
      %p51 = por %p49, %p50
      %s53 = sadd.s32 %s52, 1
      %p56 = scmp.eq.s32.totalorder %s18, 1
      %p57 = scmp.ne.s32.totalorder %s52, %s54
      %p58 = scmp.eq.s32.totalorder %s18, 0
      %p59 = por %p57, %p58
      %p60 = scmp.ne.s32.totalorder %s52, %s54
      %p61 = scmp.eq.s32.totalorder %s23, 1
      %p62 = por %p60, %p61
      %p63 = scmp.ne.s32.totalorder %s54, %s55
      %p64 = scmp.eq.s32.totalorder %s23, 0
      %p65 = por %p63, %p64
      %p66 = scmp.ne.s32.totalorder %s54, %s55
      %p67 = scmp.eq.s32.totalorder %s24, 1
      %p68 = por %p66, %p67
      %p70 = scmp.ne.s32.totalorder %s55, %s69
      %p71 = scmp.eq.s32.totalorder %s24, 0
      %p72 = por %p70, %p71
      %s74 = sadd.s32 %s73, 1
      %p77 = scmp.eq.s32.totalorder %s18, 1
      %p78 = scmp.ne.s32.totalorder %s73, %s75
      %p79 = scmp.eq.s32.totalorder %s18, 0
      %p80 = por %p78, %p79
      %p81 = scmp.ne.s32.totalorder %s73, %s75
      %p82 = scmp.eq.s32.totalorder %s23, 1
      %p83 = por %p81, %p82
      %p84 = scmp.ne.s32.totalorder %s75, %s76
      %p85 = scmp.eq.s32.totalorder %s23, 0
      %p86 = por %p84, %p85
      %p87 = scmp.ne.s32.totalorder %s75, %s76
      %p88 = scmp.eq.s32.totalorder %s24, 1
      %p89 = por %p87, %p88
      %p91 = scmp.ne.s32.totalorder %s76, %s90
      %p92 = scmp.eq.s32.totalorder %s24, 0
      %p93 = por %p91, %p92
      %s95 = sadd.s32 %s94, 1
      %p98 = scmp.eq.s32.totalorder %s18, 1
      %p99 = scmp.ne.s32.totalorder %s94, %s96
      %p100 = scmp.eq.s32.totalorder %s18, 0
      %p101 = por %p99, %p100
      %p102 = scmp.ne.s32.totalorder %s94, %s96
      %p103 = scmp.eq.s32.totalorder %s23, 1
      %p104 = por %p102, %p103
      %p105 = scmp.ne.s32.totalorder %s96, %s97
      %p106 = scmp.eq.s32.totalorder %s23, 0
      %p107 = por %p105, %p106
      %p108 = scmp.ne.s32.totalorder %s96, %s97
      %p109 = scmp.eq.s32.totalorder %s24, 1
      %p110 = por %p108, %p109
      %p112 = scmp.ne.s32.totalorder %s97, %s111
      %p113 = scmp.eq.s32.totalorder %s24, 0
      %p114 = por %p112, %p113
      %s116 = sadd.s32 %s115, 1
      %p119 = scmp.eq.s32.totalorder %s18, 1
      %p120 = scmp.ne.s32.totalorder %s115, %s117
      %p121 = scmp.eq.s32.totalorder %s18, 0
      %p122 = por %p120, %p121
      %p123 = scmp.ne.s32.totalorder %s115, %s117
      %p124 = scmp.eq.s32.totalorder %s23, 1
      %p125 = por %p123, %p124
      %p126 = scmp.ne.s32.totalorder %s117, %s118
      %p127 = scmp.eq.s32.totalorder %s23, 0
      %p128 = por %p126, %p127
      %p129 = scmp.ne.s32.totalorder %s117, %s118
      %p130 = scmp.eq.s32.totalorder %s24, 1
      %p131 = por %p129, %p130
      %p133 = scmp.ne.s32.totalorder %s118, %s132
      %p134 = scmp.eq.s32.totalorder %s24, 0
      %p135 = por %p133, %p134
      %s137 = sadd.s32 %s136, 1
      %p140 = scmp.eq.s32.totalorder %s18, 1
      %p141 = scmp.ne.s32.totalorder %s136, %s138
      %p142 = scmp.eq.s32.totalorder %s18, 0
      %p143 = por %p141, %p142
      %p144 = scmp.ne.s32.totalorder %s136, %s138
      %p145 = scmp.eq.s32.totalorder %s23, 1
      %p146 = por %p144, %p145
      %p147 = scmp.ne.s32.totalorder %s138, %s139
      %p148 = scmp.eq.s32.totalorder %s23, 0
      %p149 = por %p147, %p148
      %p150 = scmp.ne.s32.totalorder %s138, %s139
      %p151 = scmp.eq.s32.totalorder %s24, 1
      %p152 = por %p150, %p151
      %p154 = scmp.ne.s32.totalorder %s139, %s153
      %p155 = scmp.eq.s32.totalorder %s24, 0
      %p156 = por %p154, %p155
      %s158 = sadd.s32 %s157, 1
      %p161 = scmp.eq.s32.totalorder %s18, 1
      %p162 = scmp.ne.s32.totalorder %s157, %s159
      %p163 = scmp.eq.s32.totalorder %s18, 0
      %p164 = por %p162, %p163
      %p165 = scmp.ne.s32.totalorder %s157, %s159
      %p166 = scmp.eq.s32.totalorder %s23, 1
      %p167 = por %p165, %p166
      %p168 = scmp.ne.s32.totalorder %s159, %s160
      %p169 = scmp.eq.s32.totalorder %s23, 0
      %p170 = por %p168, %p169
      %p171 = scmp.ne.s32.totalorder %s159, %s160
      %p172 = scmp.eq.s32.totalorder %s24, 1
      %p173 = por %p171, %p172
      %p175 = scmp.ne.s32.totalorder %s160, %s174
      %p176 = scmp.eq.s32.totalorder %s24, 0
      %p177 = por %p175, %p176
      %s178 = ssub.s32 %s18, %s25
      %p179 = scmp.eq.s32.totalorder %s178, 0
      %s181 = sadd.s32 %s180, 1
      %s182 = scalar_select %p179, %s180, %s181
      %p185 = pneg %p179
      %p186 = scmp.eq.s32.totalorder %s18, 1
      %p187 = por %p185, %p186
      %p188 = scmp.ne.s32.totalorder %s180, %s183
      %p189 = scmp.eq.s32.totalorder %s18, 0
      %p190 = por %p188, %p189
      %p191 = scmp.ne.s32.totalorder %s180, %s183
      %p192 = scmp.eq.s32.totalorder %s23, 1
      %p193 = por %p191, %p192
      %p194 = scmp.ne.s32.totalorder %s183, %s184
      %p195 = scmp.eq.s32.totalorder %s23, 0
      %p196 = por %p194, %p195
      %p197 = scmp.ne.s32.totalorder %s183, %s184
      %p198 = scmp.eq.s32.totalorder %s24, 1
      %p199 = por %p197, %p198
      %p201 = scmp.ne.s32.totalorder %s184, %s200
      %p202 = scmp.eq.s32.totalorder %s24, 0
      %p203 = por %p201, %p202
      %p204 = scmp.le.s32.totalorder 1, %s18
      %p205 = scmp.lt.s32.totalorder %s18, 3
      %p206 = pnand %p204, %p205
      %p207 = pneg %p206
      // Predicated region
      $region9: #{tpu_custom_call.1} parent=5 // pred_check
        _
      $region10: #{tpu_custom_call.1} parent=5 // pred_check_branch
        %209 = sbr.rel (%p206) target = $region12
      $region11: #{tpu_custom_call.1} parent=5 // pred_region
        %s210 = ssub.s32 %s18, 1
        // Predicated region
        $region13: #{tpu_custom_call.1} parent=11 // pred_check
          %p211 = pneg %p65
        $region14: #{tpu_custom_call.1} parent=11 // pred_check_branch
          %213 = sbr.rel (%p211) target = $region16
        $region15: #{tpu_custom_call.1} parent=11 // pred_region
          _
        $region16: #{tpu_custom_call.1} parent=11 // pred_fallthru
          _
        // Predicated region
        $region17: #{tpu_custom_call.1} parent=11 // pred_check
          %p214 = pneg %p86
        $region18: #{tpu_custom_call.1} parent=11 // pred_check_branch
          %216 = sbr.rel (%p214) target = $region20
        $region19: #{tpu_custom_call.1} parent=11 // pred_region
          _
        $region20: #{tpu_custom_call.1} parent=11 // pred_fallthru
          _
        // Predicated region
        $region21: #{tpu_custom_call.1} parent=11 // pred_check
          %p217 = pneg %p107
        $region22: #{tpu_custom_call.1} parent=11 // pred_check_branch
          %219 = sbr.rel (%p217) target = $region24
        $region23: #{tpu_custom_call.1} parent=11 // pred_region
          _
        $region24: #{tpu_custom_call.1} parent=11 // pred_fallthru
          _
        // Predicated region
        $region25: #{tpu_custom_call.1} parent=11 // pred_check
          %p220 = pneg %p128
        $region26: #{tpu_custom_call.1} parent=11 // pred_check_branch
          %222 = sbr.rel (%p220) target = $region28
        $region27: #{tpu_custom_call.1} parent=11 // pred_region
          _
        $region28: #{tpu_custom_call.1} parent=11 // pred_fallthru
          _
        // Predicated region
        $region29: #{tpu_custom_call.1} parent=11 // pred_check
          %p223 = pneg %p149
        $region30: #{tpu_custom_call.1} parent=11 // pred_check_branch
          %225 = sbr.rel (%p223) target = $region32
        $region31: #{tpu_custom_call.1} parent=11 // pred_region
          _
        $region32: #{tpu_custom_call.1} parent=11 // pred_fallthru
          _
        // Predicated region
        $region33: #{tpu_custom_call.1} parent=11 // pred_check
          %p226 = pneg %p170
        $region34: #{tpu_custom_call.1} parent=11 // pred_check_branch
          %228 = sbr.rel (%p226) target = $region36
        $region35: #{tpu_custom_call.1} parent=11 // pred_region
          _
        $region36: #{tpu_custom_call.1} parent=11 // pred_fallthru
          _
      $region12: #{tpu_custom_call.1} parent=5 // pred_fallthru
        _
      %p229 = scmp.lt.s32.totalorder %s18, 2
      // Predicated region
      $region37: #{tpu_custom_call.1} parent=5 // pred_check
        %p230 = pneg %p229
      $region38: #{tpu_custom_call.1} parent=5 // pred_check_branch
        %232 = sbr.rel (%p230) target = $region40
      $region39: #{tpu_custom_call.1} parent=5 // pred_region
        // Predicated region
        $region41: #{tpu_custom_call.1} parent=39 // pred_check
          %p233 = pneg %p38
        $region42: #{tpu_custom_call.1} parent=39 // pred_check_branch
          %235 = sbr.rel (%p233) target = $region44
        $region43: #{tpu_custom_call.1} parent=39 // pred_region
          %s236 = smul.u32 32, %s18
          %p237 = scmp.lt.s32.totalorder %s236, 63
          %s238 = scalar_select %p237, %s236, 63
          %s239 = smul.addr %s238, 8
          %s240 = scalar_lea.vmem %s0, %s239
          %s241 = smul.u32 32, %s18
        $region44: #{tpu_custom_call.1} parent=39 // pred_fallthru
          _
      $region40: #{tpu_custom_call.1} parent=5 // pred_fallthru
        _
      %p242 = scmp.le.s32.totalorder 1, %s18
      %p243 = scmp.lt.s32.totalorder %s18, 3
      %p244 = pnand %p242, %p243
      %p245 = pneg %p244
      // Predicated region
      $region45: #{tpu_custom_call.1} parent=5 // pred_check
        _
      $region46: #{tpu_custom_call.1} parent=5 // pred_check_branch
        %247 = sbr.rel (%p244) target = $region48
      $region47: #{tpu_custom_call.1} parent=5 // pred_region
        %s248 = ssub.s32 %s18, 1
        %s249 = smul.u32 32, %s23
        %p250 = scmp.lt.s32.totalorder %s249, 63
        %s251 = scalar_select %p250, %s249, 63
        %s252 = smul.addr %s251, 8
        %s253 = scalar_lea.vmem %s0, %s252
        %p254 = pneg %p44
        %p255 = pneg %p41
        %p256 = pneg %p65
        %p257 = pneg %p62
        %p258 = pneg %p86
        %p259 = pneg %p83
        %p260 = pneg %p107
        %p261 = pneg %p104
        %p262 = pneg %p128
        %p263 = pneg %p125
        %p264 = pneg %p149
        %p265 = pneg %p146
        %p266 = pneg %p170
        %p267 = pneg %p167
        %p268 = pneg %p196
        %p269 = pneg %p193
        %s270 = sand.u32 %s183, 1
        %s271 = scalar_lea.sflag [#allocation4], %s270
        %s272 = sand.u32 %s183, 1
        %s273 = smul.addr %s272, 2
        %s274 = scalar_lea.vmem [#allocation3], %s273
        %s275 = smul.u32 32, %s23
        %p276 = scmp.lt.s32.totalorder %s275, 63
        %s277 = scalar_select %p276, %s275, 63
        %s278 = smul.addr %s277, 8
        %s279 = scalar_lea.vmem %s0, %s278
        %s280 = smul.u32 32, %s23
        %s281 = smul.u32 2, %s23
        %v283 = vld [vmem:[%s279] sm:$0xff]
        %v284 = vld [vmem:[%s279 + $0x8] sm:$0xff]
        %v285 = vld [vmem:[%s279 + $0x10] sm:$0xff]
        %v286 = vld [vmem:[%s279 + $0x18] sm:$0xff]
        %v287 = vld [vmem:[%s279 + $0x20] sm:$0xff]
        %v288 = vld [vmem:[%s279 + $0x28] sm:$0xff]
        %v289 = vld [vmem:[%s279 + $0x30] sm:$0xff]
        %v290 = vld [vmem:[%s279 + $0x38] sm:$0xff]
        %v291 = vld [vmem:[%s279 + $0x40] sm:$0xff]
        %v292 = vld [vmem:[%s279 + $0x48] sm:$0xff]
        %v293 = vld [vmem:[%s279 + $0x50] sm:$0xff]
        %v294 = vld [vmem:[%s279 + $0x58] sm:$0xff]
        %v295 = vld [vmem:[%s279 + $0x60] sm:$0xff]
        %v296 = vld [vmem:[%s279 + $0x68] sm:$0xff]
        %v297 = vld [vmem:[%s279 + $0x70] sm:$0xff]
        %v298 = vld [vmem:[%s279 + $0x78] sm:$0xff]
        %v299 = vld [vmem:[%s279 + $0x80] sm:$0xff]
        %v300 = vld [vmem:[%s279 + $0x88] sm:$0xff]
        %v301 = vld [vmem:[%s279 + $0x90] sm:$0xff]
        %v302 = vld [vmem:[%s279 + $0x98] sm:$0xff]
        %v303 = vld [vmem:[%s279 + $0xa0] sm:$0xff]
        %v304 = vld [vmem:[%s279 + $0xa8] sm:$0xff]
        %v305 = vld [vmem:[%s279 + $0xb0] sm:$0xff]
        %v306 = vld [vmem:[%s279 + $0xb8] sm:$0xff]
        %v307 = vld [vmem:[%s279 + $0xc0] sm:$0xff]
        %v308 = vld [vmem:[%s279 + $0xc8] sm:$0xff]
        %v309 = vld [vmem:[%s279 + $0xd0] sm:$0xff]
        %v310 = vld [vmem:[%s279 + $0xd8] sm:$0xff]
        %v311 = vld [vmem:[%s279 + $0xe0] sm:$0xff]
        %v312 = vld [vmem:[%s279 + $0xe8] sm:$0xff]
        %v313 = vld [vmem:[%s279 + $0xf0] sm:$0xff]
        %v314 = vld [vmem:[%s279 + $0xf8] sm:$0xff]
        %v315 = vpack.c.bf16 %v284, %v283
        %v316 = vpack.c.bf16 %v286, %v285
        %v317 = vpack.c.bf16 %v288, %v287
        %v318 = vpack.c.bf16 %v290, %v289
        %v319 = vpack.c.bf16 %v292, %v291
        %v320 = vpack.c.bf16 %v294, %v293
        %v321 = vpack.c.bf16 %v296, %v295
        %v322 = vpack.c.bf16 %v298, %v297
        %v323 = vpack.c.bf16 %v300, %v299
        %v324 = vpack.c.bf16 %v302, %v301
        %v325 = vpack.c.bf16 %v304, %v303
        %v326 = vpack.c.bf16 %v306, %v305
        %v327 = vpack.c.bf16 %v308, %v307
        %v328 = vpack.c.bf16 %v310, %v309
        %v329 = vpack.c.bf16 %v312, %v311
        %v330 = vpack.c.bf16 %v314, %v313
        %v331 = vld [vmem:[%s1] sm:$0xf]
        %v332 = vld [vmem:[%s1 + $0x4] sm:$0xf]
        %v333 = vld [vmem:[%s1 + $0x8] sm:$0xf]
        %v334 = vld [vmem:[%s1 + $0xc] sm:$0xf]
        %v335 = vld [vmem:[%s2] sm:$0xff]
        %v336 = vld [vmem:[%s2 + $0x8] sm:$0xff]
        %v337 = vld [vmem:[%s2 + $0x10] sm:$0xff]
        %v338 = vld [vmem:[%s2 + $0x18] sm:$0xff]
        %340 = vset.pattern.permute.xlu0 0
        %341 = vperm.xlu0 %340, %v335
        %v342 = vpop.permute.xlu0 %341
        %345 = vset.pattern.permute.xlu0 0
        %346 = vperm.xlu0 %345, %v336
        %v347 = vpop.permute.xlu0 %346
        %350 = vset.pattern.permute.xlu0 0
        %351 = vperm.xlu0 %350, %v337
        %v352 = vpop.permute.xlu0 %351
        %355 = vset.pattern.permute.xlu0 0
        %356 = vperm.xlu0 %355, %v338
        %v357 = vpop.permute.xlu0 %356
        %v363 = vunpack.c.l.b16 %v331
        %v364 = vunpack.c.l.b16 %v332
        %v365 = vunpack.c.l.b16 %v333
        %v366 = vunpack.c.l.b16 %v334
        %v367 = vpack.c.b16 %v364, %v363
        %v368 = vpack.c.b16 %v366, %v365
        %vm369 = vcmask 64512
        %v371 = vsel %vm369, %v367, 0
        %v374 = vsel %vm369, %v368, 0
        %v377 = vsel %vm369, %v315, 0
        %v380 = vsel %vm369, %v316, 0
        %v383 = vsel %vm369, %v317, 0
        %v386 = vsel %vm369, %v318, 0
        %v389 = vsel %vm369, %v319, 0
        %v392 = vsel %vm369, %v320, 0
        %v395 = vsel %vm369, %v321, 0
        %v398 = vsel %vm369, %v322, 0
        %v401 = vsel %vm369, %v323, 0
        %v404 = vsel %vm369, %v324, 0
        %v407 = vsel %vm369, %v325, 0
        %v410 = vsel %vm369, %v326, 0
        %v413 = vsel %vm369, %v327, 0
        %v416 = vsel %vm369, %v328, 0
        %v419 = vsel %vm369, %v329, 0
        %v422 = vsel %vm369, %v330, 0
        %424 = vmatprep.subr.bf16.mxu0 0
        %425 = vmatpush1.bf16.xpose.msra.mxu0 %v377
        %426 = vmatprep.subr.bf16.mxu0 0
        %427 = vmatpush1.bf16.xpose.msra.mxu0 %v380
        %428 = vmatprep.subr.bf16.mxu0 0
        %429 = vmatpush1.bf16.xpose.msra.mxu0 %v383
        %430 = vmatprep.subr.bf16.mxu0 0
        %431 = vmatpush1.bf16.xpose.msra.mxu0 %v386
        %432 = vmatprep.subr.bf16.mxu0 0
        %433 = vmatpush1.bf16.xpose.msra.mxu0 %v389
        %434 = vmatprep.subr.bf16.mxu0 0
        %435 = vmatpush1.bf16.xpose.msra.mxu0 %v392
        %436 = vmatprep.subr.bf16.mxu0 0
        %437 = vmatpush1.bf16.xpose.msra.mxu0 %v395
        %438 = vmatprep.subr.bf16.mxu0 0
        %439 = vmatpush1.bf16.xpose.msra.mxu0 %v398
        %440 = vmatprep.subr.bf16.mxu0 0
        %441 = vmatpush1.bf16.xpose.msra.mxu0 %v401
        %442 = vmatprep.subr.bf16.mxu0 0
        %443 = vmatpush1.bf16.xpose.msra.mxu0 %v404
        %444 = vmatprep.subr.bf16.mxu0 0
        %445 = vmatpush1.bf16.xpose.msra.mxu0 %v407
        %446 = vmatprep.subr.bf16.mxu0 0
        %447 = vmatpush1.bf16.xpose.msra.mxu0 %v410
        %448 = vmatprep.subr.bf16.mxu0 0
        %449 = vmatpush1.bf16.xpose.msra.mxu0 %v413
        %450 = vmatprep.subr.bf16.mxu0 0
        %451 = vmatpush1.bf16.xpose.msra.mxu0 %v416
        %452 = vmatprep.subr.bf16.mxu0 0
        %453 = vmatpush1.bf16.xpose.msra.mxu0 %v419
        %454 = vmatprep.subr.bf16.mxu0 0
        %455 = vmatpush1.bf16.xpose.msra.mxu0 %v422
        %456 = vmatprep.mubr.bf16.mxu0 0
        %457 = vmatmul.mubr.bf16.gmra.mrb[0].mxu0 %v371
        %v458 = vpop.f32.mrb[0].mxu0
        %v459 = vadd.f32 %v342, %v458
        %v460 = vpop.f32.mrb[0].mxu0
        %v461 = vadd.f32 %v342, %v460
        %v462 = vpop.f32.mrb[0].mxu0
        %v463 = vadd.f32 %v347, %v462
        %v464 = vpop.f32.mrb[0].mxu0
        %v465 = vadd.f32 %v347, %v464
        %466 = vmatprep.mubr.bf16.mxu0 0
        %467 = vmatmul.mubr.bf16.gmra.mrb[0].mxu0 %v374
        %v468 = vpop.f32.mrb[0].mxu0
        %v469 = vadd.f32 %v352, %v468
        %v470 = vpop.f32.mrb[0].mxu0
        %v471 = vadd.f32 %v352, %v470
        %v472 = vpop.f32.mrb[0].mxu0
        %v473 = vadd.f32 %v357, %v472
        %v474 = vpop.f32.mrb[0].mxu0
        %v475 = vadd.f32 %v357, %v474
        %476 = vdwg.mxu0
        %v477 = vmax.f32 %v459, 0.0
        %v478 = vmax.f32 %v461, 0.0
        %v479 = vmax.f32 %v463, 0.0
        %v480 = vmax.f32 %v465, 0.0
        %v481 = vmax.f32 %v469, 0.0
        %v482 = vmax.f32 %v471, 0.0
        %v483 = vmax.f32 %v473, 0.0
        %v484 = vmax.f32 %v475, 0.0
        %v485 = vld [vmem:[%s3] sm:$0xf]
        %v486 = vld [vmem:[%s3 + $0x4] sm:$0xf]
        %v487 = vpack.c.bf16 %v479, %v477
        %v488 = vpack.c.bf16 %v480, %v478
        %v489 = vpack.c.bf16 %v483, %v481
        %v490 = vpack.c.bf16 %v484, %v482
        %v491 = vld [vmem:[%s4] sm:$0xff]
        %v492 = vld [vmem:[%s4 + $0x8] sm:$0xff]
        %494 = vset.pattern.permute.xlu0 0
        %495 = vperm.xlu0 %494, %v491
        %v496 = vpop.permute.xlu0 %495
        %499 = vset.pattern.permute.xlu0 0
        %500 = vperm.xlu0 %499, %v492
        %v501 = vpop.permute.xlu0 %500
        %v505 = vunpack.c.l.b16 %v485
        %v506 = vunpack.c.l.b16 %v486
        %v507 = vpack.c.b16 %v506, %v505
        %vm508 = vcmask 261120
        %v510 = vsel %vm508, %v507, 0
        %512 = vmatprep.subr.bf16.mxu0 %v488
        %513 = vmatpush1.bf16.msra.mxu0 %v487
        %514 = vmatprep.subr.bf16.mxu0 %v490
        %515 = vmatpush1.bf16.msra.mxu0 %v489
        %516 = vmatprep.subr.bf16.mxu0 0
        %517 = vmatpush1.bf16.msra.mxu0 0
        %518 = vmatprep.subr.bf16.mxu0 0
        %519 = vmatpush1.bf16.msra.mxu0 0
        %520 = vmatprep.subr.bf16.mxu0 0
        %521 = vmatpush1.bf16.msra.mxu0 0
        %522 = vmatprep.subr.bf16.mxu0 0
        %523 = vmatpush1.bf16.msra.mxu0 0
        %524 = vmatprep.subr.bf16.mxu0 0
        %525 = vmatpush1.bf16.msra.mxu0 0
        %526 = vmatprep.subr.bf16.mxu0 0
        %527 = vmatpush1.bf16.msra.mxu0 0
        %528 = vmatprep.subr.bf16.mxu0 0
        %529 = vmatpush1.bf16.msra.mxu0 0
        %530 = vmatprep.subr.bf16.mxu0 0
        %531 = vmatpush1.bf16.msra.mxu0 0
        %532 = vmatprep.subr.bf16.mxu0 0
        %533 = vmatpush1.bf16.msra.mxu0 0
        %534 = vmatprep.subr.bf16.mxu0 0
        %535 = vmatpush1.bf16.msra.mxu0 0
        %536 = vmatprep.subr.bf16.mxu0 0
        %537 = vmatpush1.bf16.msra.mxu0 0
        %538 = vmatprep.subr.bf16.mxu0 0
        %539 = vmatpush1.bf16.msra.mxu0 0
        %540 = vmatprep.subr.bf16.mxu0 0
        %541 = vmatpush1.bf16.msra.mxu0 0
        %542 = vmatprep.subr.bf16.mxu0 0
        %543 = vmatpush1.bf16.msra.mxu0 0
        %544 = vmatprep.mubr.bf16.mxu0 0
        %545 = vmatmul.mubr.bf16.gmra.mrb[0].mxu0 %v510
        %v546 = vpop.f32.mrb[0].mxu0
        %v547 = vadd.f32 %v496, %v546
        %v548 = vpop.f32.mrb[0].mxu0
        %v549 = vadd.f32 %v496, %v548
        %v550 = vpop.f32.mrb[0].mxu0
        %v551 = vadd.f32 %v501, %v550
        %v552 = vpop.f32.mrb[0].mxu0
        %v553 = vadd.f32 %v501, %v552
        %554 = vdwg.mxu0
        %v555 = vmax.f32 %v547, 0.0
        %v556 = vmax.f32 %v549, 0.0
        %v557 = vmax.f32 %v551, 0.0
        %v558 = vmax.f32 %v553, 0.0
        %v559 = vld [vmem:[%s5] sm:$0x1]
        %v560 = vpack.c.bf16 %v557, %v555
        %v561 = vpack.c.bf16 %v558, %v556
        %v562 = vld [vmem:[#allocation2] sm:$0x1]
        %564 = vset.pattern.permute.xlu0 0
        %565 = vperm.xlu0 %564, %v562
        %v566 = vpop.permute.xlu0 %565
        %v568 = vlaneseq
        %v569 = vshrl.u32 %v568, 7
        %v570 = vsub.s32 0, %v569
        %v571 = vrot.slane %v566, %v570
        %vm572 = vcmask 130048
        %v574 = vsel %vm572, %v559, 0
        %576 = vmatprep.subr.bf16.mxu0 %v561
        %577 = vmatpush1.bf16.msra.mxu0 %v560
        %578 = vmatprep.subr.bf16.mxu0 0
        %579 = vmatpush1.bf16.msra.mxu0 0
        %580 = vmatprep.subr.bf16.mxu0 0
        %581 = vmatpush1.bf16.msra.mxu0 0
        %582 = vmatprep.subr.bf16.mxu0 0
        %583 = vmatpush1.bf16.msra.mxu0 0
        %584 = vmatprep.subr.bf16.mxu0 0
        %585 = vmatpush1.bf16.msra.mxu0 0
        %586 = vmatprep.subr.bf16.mxu0 0
        %587 = vmatpush1.bf16.msra.mxu0 0
        %588 = vmatprep.subr.bf16.mxu0 0
        %589 = vmatpush1.bf16.msra.mxu0 0
        %590 = vmatprep.subr.bf16.mxu0 0
        %591 = vmatpush1.bf16.msra.mxu0 0
        %592 = vmatprep.subr.bf16.mxu0 0
        %593 = vmatpush1.bf16.msra.mxu0 0
        %594 = vmatprep.subr.bf16.mxu0 0
        %595 = vmatpush1.bf16.msra.mxu0 0
        %596 = vmatprep.subr.bf16.mxu0 0
        %597 = vmatpush1.bf16.msra.mxu0 0
        %598 = vmatprep.subr.bf16.mxu0 0
        %599 = vmatpush1.bf16.msra.mxu0 0
        %600 = vmatprep.subr.bf16.mxu0 0
        %601 = vmatpush1.bf16.msra.mxu0 0
        %602 = vmatprep.subr.bf16.mxu0 0
        %603 = vmatpush1.bf16.msra.mxu0 0
        %604 = vmatprep.subr.bf16.mxu0 0
        %605 = vmatpush1.bf16.msra.mxu0 0
        %606 = vmatprep.subr.bf16.mxu0 0
        %607 = vmatpush1.bf16.msra.mxu0 0
        %608 = vmatprep.mubr.bf16.mxu0 0
        %609 = vmatmul.mubr.bf16.gmra.mrb[0].mxu0 %v574
        %v610 = vpop.f32.mrb[0].mxu0
        %v611 = vadd.f32 %v571, %v610
        %v612 = vpop.f32.mrb[0].mxu0
        %v613 = vadd.f32 %v571, %v612
        %v614 = vpop.f32.mrb[0].mxu0
        %v615 = vpop.f32.mrb[0].mxu0
        %616 = vdwg.mxu0
        %v619 = vcombine.low %v611, %v613
        %v621 = vunpack.c.l.s4 1966171168
        %v622 = vunpack.c.0.s8 %v621
        %v623 = vlaneseq
        %v624 = vshrl.u32 %v623, 7
        %v625 = vsub.s32 %v622, %v624
        %v626 = vrot.slane %v619, %v625
        %v628 = vunpack.c.l.s4 1966171168
        %v629 = vunpack.c.0.s8 %v628
        %v630 = vlaneseq
        %v631 = vshrl.u32 %v630, 7
        %v632 = vsub.s32 %v629, %v631
        %v633 = vrot.slane %v626, %v632
        %v635 = vlaneseq
        %vm636 = vcmp.ge.s32.totalorder %v635, 0
        %vm637 = vcmp.lt.s32.totalorder %v635, 256
        %vm638 = vmand %vm636, %vm637
        %639 = vst.msk [vmem:[%s274] sm:$0x3] %vm638, %v633
        %s640 = sand.u32 %s183, 1
        %s641 = scalar_lea.sflag [#allocation4], %s640
        %s642 = sand.u32 %s183, 1
        %s643 = smul.addr %s642, 2
        %s644 = scalar_lea.vmem [#allocation3], %s643
        // Predicated region
        $region49: #{tpu_custom_call.1} parent=47 // pred_check
          %p645 = pneg %p193
        $region50: #{tpu_custom_call.1} parent=47 // pred_check_branch
          %647 = sbr.rel (%p645) target = $region52
        $region51: #{tpu_custom_call.1} parent=47 // pred_region
          %s648 = smul.u32 2, %s23
          %s650 = ssub.s32 32, 32
          %651 = vsyncadd %s641, %s650
          %s652 = smul.addr %s648, 16
          %s653 = scalar_lea.hbm %s7, %s652
          %s655 = sshll.u32 %s644, 4
          %s656 = int_to_ptr.vmem [resolvable:$true] %s655
          %658 = dma.vmem_to_hbm [thread:$0]  %s656, 32, %s653, %s641
        $region52: #{tpu_custom_call.1} parent=47 // pred_fallthru
          _
      $region48: #{tpu_custom_call.1} parent=5 // pred_fallthru
        _
      %p659 = scmp.le.s32.totalorder 2, %s18
      // Predicated region
      $region53: #{tpu_custom_call.1} parent=5 // pred_check
        %p660 = pneg %p659
      $region54: #{tpu_custom_call.1} parent=5 // pred_check_branch
        %662 = sbr.rel (%p660) target = $region56
      $region55: #{tpu_custom_call.1} parent=5 // pred_region
        %s663 = ssub.s32 %s18, 2
        // Predicated region
        $region57: #{tpu_custom_call.1} parent=55 // pred_check
          %p664 = pneg %p199
        $region58: #{tpu_custom_call.1} parent=55 // pred_check_branch
          %666 = sbr.rel (%p664) target = $region60
        $region59: #{tpu_custom_call.1} parent=55 // pred_region
          %s667 = sand.u32 %s184, 1
          %s668 = scalar_lea.sflag [#allocation4], %s667
          %s669 = sand.u32 %s184, 1
          %s670 = smul.addr %s669, 2
          %s671 = scalar_lea.vmem [#allocation3], %s670
          %672 = dma.done %s668, 32
        $region60: #{tpu_custom_call.1} parent=55 // pred_fallthru
          _
      $region56: #{tpu_custom_call.1} parent=5 // pred_fallthru
        _
    $region6: #{tpu_custom_call.1} parent=1 // loop_footer
      %s22 = sadd.s32 1, %s18
    $region7: #{tpu_custom_call.1} parent=1 // loop_footer_branch
      %17 = sbr.rel target = $region3
    $region8: #{tpu_custom_call.1} parent=1 // loop_exit
      _
    %673 = vsyncpa [#allocation4], 1
    %s674 = scalar_lea.sflag [#allocation4], 1
    %675 = vsyncpa %s674, 1

</llo_original>
